<compile_context>
chip_gen: v7x
topology: tpu7x:2x2x1
jax: 0.10.0
libtpu: 0.0.40
codegen_flags: <defaults>
</compile_context>

<pallas_src>
import math

import jax
import jax.numpy as jnp
from jax.experimental import pallas as pl
from jax.experimental.pallas import tpu as pltpu


# ---------------------------------------------------------------------------
# Kernels
# ---------------------------------------------------------------------------

def _mul_kernel(x_ref, v_ref, o_ref):
    # Cast rides the existing DMA (no wrapper-side convert pass).  v_ref is either a
    # (tile_rows, 1) per-row column, a resident (1, lanes) row, or a full
    # (tile_rows, lanes) tile; jnp broadcasting handles all three on the VPU.
    o_ref[...] = x_ref[...].astype(o_ref.dtype) * v_ref[...]


def _mul_scalar_kernel(x_ref, v_ref, o_ref):
    # Fully-scalar buffer: one SMEM scalar splatted across the tile.
    o_ref[...] = x_ref[...].astype(o_ref.dtype) * v_ref[0].astype(o_ref.dtype)


# ---------------------------------------------------------------------------
# Wrapper
# ---------------------------------------------------------------------------

_MAX_LANE_COLLAPSE = 8192                 # cap collapsed lane width so rows stay tileable
_BLOCK_BYTES = 4 * 1024 * 1024            # ~4 MiB x/out blocks: ~85-86% of HBM roofline
_MAX_RESIDENT_V_BYTES = 2 * 1024 * 1024   # cap for the resident (1, lanes) value row
_MAX_VMEM_FOOTPRINT = 40 * 1024 * 1024    # beyond this, let plain XLA handle it


def _padded_vmem_bytes(rows, cols, dtype):
    """Approximate VMEM bytes of one (rows, cols) block after (8,128)-tiling/padding."""
    its = jnp.dtype(dtype).itemsize
    sub = max(8, 32 // max(1, its))       # sublane packing quantum per dtype
    rp = pl.cdiv(rows, sub) * sub
    cp = pl.cdiv(cols, 128) * 128
    return rp * cp * its


def pallas_multiply(x: jax.Array, value: jax.Array) -> jax.Array:
    """Elementwise multiply with broadcasting, matching torch's `x * self.value`."""
    out_shape = jnp.broadcast_shapes(x.shape, value.shape)
    # TODO(synk): jnp.result_type promotion may differ from torch for int/bool buffers.
    out_dtype = jnp.result_type(x.dtype, value.dtype)

    nd = len(out_shape)
    total = math.prod(out_shape) if nd else 1
    if nd == 0 or total == 0:
        # Degenerate scalar / empty cases: not worth a kernel launch.
        return (x * value).astype(out_dtype)

    x_itemsize = jnp.dtype(x.dtype).itemsize
    out_itemsize = jnp.dtype(out_dtype).itemsize

    # Right-align value's shape against the broadcast output shape.
    v_aligned = (1,) * (nd - value.ndim) + tuple(value.shape)

    # Trailing / leading runs of broadcast (size-1) dims in value.
    t = 0
    while t < nd and v_aligned[nd - 1 - t] == 1:
        t += 1
    h = 0
    while h < nd and v_aligned[h] == 1:
        h += 1

    def collapse(floor):
        # Greedily collapse trailing dims onto the lane axis, not crossing `floor`.
        split = nd - 1
        lanes = out_shape[-1]
        while split > floor and lanes * out_shape[split - 1] <= _MAX_LANE_COLLAPSE:
            split -= 1
            lanes *= out_shape[split]
        return split, lanes

    # ---- choose how `value` travels and the 2-D lane-dense view of x/out ----
    if t == nd:
        # Fully scalar buffer.
        v_mode = "smem"
        split, lanes = collapse(0)
    else:
        # Candidate A: value constant over all lane dims -> per-row (rows, 1) column.
        if t >= 1:
            split_a, lanes_a = collapse(nd - t)
        else:
            split_a, lanes_a = None, 0
        # Candidate B: value constant over all row dims -> small resident (1, lanes) row.
        split_b = h
        lanes_b = math.prod(out_shape[h:])
        while split_b > 0 and lanes_b < 128:   # keep the output lane-dense
            split_b -= 1
            lanes_b *= out_shape[split_b]
        b_ok = (h >= 1) and (lanes_b * out_itemsize <= _MAX_RESIDENT_V_BYTES)

        if split_a is not None and lanes_a >= 128:
            v_mode, split, lanes = "col", split_a, lanes_a
        elif b_ok and lanes_b >= 128:
            v_mode, split, lanes = "row", split_b, lanes_b
        elif split_a is not None:
            v_mode, split, lanes = "col", split_a, lanes_a
        elif b_ok:
            v_mode, split, lanes = "row", split_b, lanes_b
        else:
            # General case (value varies in both row and lane regions): stream a
            # fully-broadcast value alongside x.
            v_mode = "full"
            split, lanes = collapse(0)

    rows = math.prod(out_shape[:split]) if split > 0 else 1

    # ---- build the (small) value operand in the chosen layout ----------------
    if v_mode == "smem":
        s_dtype = jnp.float32 if jnp.issubdtype(out_dtype, jnp.floating) else jnp.int32
        v_arr = value.reshape((1,)).astype(s_dtype)
    elif v_mode == "col":
        v_arr = jnp.broadcast_to(
            value.astype(out_dtype).reshape(v_aligned[:split]),
            out_shape[:split]).reshape(rows, 1)
    elif v_mode == "row":
        v_arr = jnp.broadcast_to(
            value.astype(out_dtype).reshape(v_aligned[split:]),
            out_shape[split:]).reshape(1, lanes)
    else:  # "full"
        v_arr = jnp.broadcast_to(
            value.astype(out_dtype).reshape(v_aligned),
            out_shape).reshape(rows, lanes)

    # ---- x: native dtype, lane-dense 2-D view --------------------------------
    if x.size == total:
        x2 = x.reshape(rows, lanes)            # pure reshape, no replication / no cast
    else:
        # TODO(synk): replicated-x broadcasting could ride the BlockSpec index_map
        # instead of materializing; rare for this module (x is the network input).
        x2 = jnp.broadcast_to(x, out_shape).reshape(rows, lanes)

    # ---- row-tile sizing (dtype-aware quantum, ~4 MiB blocks) -----------------
    min_itemsize = min(x_itemsize, out_itemsize)
    quantum = max(8, 32 // max(1, min_itemsize))
    budget_rows = max(quantum, _BLOCK_BYTES // max(1, lanes * max(x_itemsize, out_itemsize)))

    if rows <= quantum:
        tile_rows = rows                       # full-extent rows: always legal
    else:
        tile_rows = min(budget_rows, rows)
        if tile_rows < rows:
            tile_rows = max(quantum, (tile_rows // quantum) * quantum)
        if pl.cdiv(rows, tile_rows) == 1:
            # >= 2 grid steps so the "parallel" axis can shard across v7x's two
            # TensorCores (one extra ~0.35us step on single-TC v5e/v6e).
            half = pl.cdiv(rows, 2)
            tile_rows = quantum * pl.cdiv(half, quantum)
    grid = (pl.cdiv(rows, tile_rows),)

    # ---- VMEM footprint & limit ----------------------------------------------
    x_block_b = _padded_vmem_bytes(tile_rows, lanes, x.dtype)
    o_block_b = _padded_vmem_bytes(tile_rows, lanes, out_dtype)
    if v_mode == "smem":
        v_block_b = 0
    elif v_mode == "col":
        v_block_b = _padded_vmem_bytes(tile_rows, 1, out_dtype)
    elif v_mode == "row":
        v_block_b = _padded_vmem_bytes(1, lanes, out_dtype)
    else:
        v_block_b = _padded_vmem_bytes(tile_rows, lanes, out_dtype)
    footprint = 2 * (x_block_b + o_block_b + v_block_b)    # double-buffered pipeline
    if footprint > _MAX_VMEM_FOOTPRINT:
        # Pathological shapes (e.g. one enormous trailing dim): let XLA handle it.
        return (x * value).astype(out_dtype)
    vmem_limit = int(min(max(footprint + (8 << 20), 16 << 20), 48 << 20))

    # ---- specs ----------------------------------------------------------------
    x_spec = pl.BlockSpec((tile_rows, lanes), lambda i: (i, 0))
    out_spec = pl.BlockSpec((tile_rows, lanes), lambda i: (i, 0))
    if v_mode == "smem":
        v_spec = pl.BlockSpec(memory_space=pltpu.MemorySpace.SMEM)
        kernel = _mul_scalar_kernel
    elif v_mode == "col":
        v_spec = pl.BlockSpec((tile_rows, 1), lambda i: (i, 0))
        kernel = _mul_kernel
    elif v_mode == "row":
        v_spec = pl.BlockSpec((1, lanes), lambda i: (0, 0))   # resident across the grid
        kernel = _mul_kernel
    else:
        v_spec = pl.BlockSpec((tile_rows, lanes), lambda i: (i, 0))
        kernel = _mul_kernel

    v_bytes = int(v_arr.size) * jnp.dtype(v_arr.dtype).itemsize
    cost = pl.CostEstimate(
        flops=rows * lanes,
        transcendentals=0,
        bytes_accessed=rows * lanes * (x_itemsize + out_itemsize) + v_bytes,
    )

    y2 = pl.pallas_call(
        kernel,
        out_shape=jax.ShapeDtypeStruct((rows, lanes), out_dtype),
        grid_spec=pltpu.PrefetchScalarGridSpec(
            num_scalar_prefetch=0,
            grid=grid,
            in_specs=[x_spec, v_spec],
            out_specs=out_spec,
        ),
        compiler_params=pltpu.CompilerParams(
            dimension_semantics=("parallel",),
            vmem_limit_bytes=vmem_limit,
        ),
        cost_estimate=cost,
    )(x2, v_arr)

    return y2.reshape(out_shape)


if __name__ == "__main__":
    key = jax.random.PRNGKey(0)
    k1, k2, k3, k4 = jax.random.split(key, 4)

    # Small NCHW input consistent with the module's forward.
    N, C, H, W = 2, 4, 16, 16
    x_nchw = jax.random.normal(k1, (N, C, H, W), dtype=jnp.float32)

    # Deterministic "registered buffers" covering the module's broadcast patterns.
    v_chan = (jnp.arange(C, dtype=jnp.float32).reshape(C, 1, 1) + 1.0) * 0.5

    cases = [
        # (1) per-channel (C,1,1): per-row column path.
        (x_nchw, v_chan),
        # (2) scalar buffer: SMEM scalar path.
        (x_nchw, jnp.asarray(0.75, dtype=jnp.float32)),
        # (3) spatial (1,1,H,W): resident (1, lanes) value-row path.
        (x_nchw, jax.random.normal(k2, (1, 1, H, W), dtype=jnp.float32)),
        # (4) narrow trailing dim: (B,C,D) with D<128 and value (C,1)
        #     -> lane-dense collapse past the broadcast floor + resident value row.
        (jax.random.normal(k3, (2, C, 32), dtype=jnp.float32),
         jnp.arange(1.0, C + 1.0, dtype=jnp.float32).reshape(C, 1)),
        # (5) mixed dtype: bf16 activations, f32 buffer -> cast rides the kernel DMA.
        (x_nchw.astype(jnp.bfloat16), v_chan),
        # (6) value with x's full shape: general streamed-value fallback.
        (x_nchw, jax.random.normal(k4, (N, C, H, W), dtype=jnp.float32)),
    ]

    for xc, vc in cases:
        y = jax.block_until_ready(pallas_multiply(xc, vc))
        y_ref = xc * vc   # pure-JAX reference (same semantics as torch x * value)
        assert y.shape == y_ref.shape and y.dtype == y_ref.dtype, (y.shape, y.dtype)
        assert jnp.allclose(y, y_ref, atol=1e-6, rtol=1e-6), "value mismatch"

    print("KERNEL_OK")
</pallas_src>

<mosaic_0001>
module attributes {stable_mosaic.version = 11 : i64} {
  func.func @_mul_kernel(%arg0: i32, %arg1: memref<8x256xf32, #tpu.memory_space<vmem>>, %arg2: memref<8x1xf32, #tpu.memory_space<vmem>>, %arg3: memref<8x256xf32, #tpu.memory_space<vmem>>) attributes {dimension_semantics = [#tpu.dimension_semantics<parallel>], iteration_bounds = array<i64: 1>, scalar_prefetch = 0 : i64, scratch_operands = 0 : i64, tpu.core_type = #tpu.core_type<tc>, window_params = [{transform_indices = @transform_0, window_bounds = array<i64: 8, 256>}, {transform_indices = @transform_1, window_bounds = array<i64: 8, 1>}, {transform_indices = @transform_2, window_bounds = array<i64: 8, 256>}]} {
    %c0 = arith.constant 0 : index
    %c0_0 = arith.constant 0 : index
    %0 = vector.load %arg1[%c0, %c0_0] : memref<8x256xf32, #tpu.memory_space<vmem>>, vector<8x256xf32>
    %c0_1 = arith.constant 0 : index
    %c0_2 = arith.constant 0 : index
    %1 = vector.load %arg2[%c0_1, %c0_2] : memref<8x1xf32, #tpu.memory_space<vmem>>, vector<8x1xf32>
    %2 = vector.broadcast %1 : vector<8x1xf32> to vector<8x256xf32>
    %3 = arith.mulf %0, %2 : vector<8x256xf32>
    %c0_3 = arith.constant 0 : index
    %c0_4 = arith.constant 0 : index
    %4 = vector.load %arg3[%c0_3, %c0_4] : memref<8x256xf32, #tpu.memory_space<vmem>>, vector<8x256xf32>
    tpu.vector_store %arg3[%c0_3, %c0_4], %3 {strides = array<i32>} : memref<8x256xf32, #tpu.memory_space<vmem>>, vector<8x256xf32>,
    return
  }
  func.func @transform_0(%arg0: i32) -> (i32, i32) {
    %c0_i32 = arith.constant 0 : i32
    %c0_i32_0 = arith.constant 0 : i32
    return %arg0, %c0_i32 : i32, i32
  }
  func.func @transform_1(%arg0: i32) -> (i32, i32) {
    %c0_i32 = arith.constant 0 : i32
    %c0_i32_0 = arith.constant 0 : i32
    return %arg0, %c0_i32 : i32, i32
  }
  func.func @transform_2(%arg0: i32) -> (i32, i32) {
    %c0_i32 = arith.constant 0 : i32
    %c0_i32_0 = arith.constant 0 : i32
    return %arg0, %c0_i32 : i32, i32
  }
}

</mosaic_0001>

<llo_original>
// kernel: tpu_custom_call.1
$region0: #{tpu_custom_call.1}
  #allocation0 [shape = 'u32[]', space=smem, size = 0x4, offset = 0x4, fixed_abs, tag = 'smem constant byte address 0x4 - core index']
  #allocation1 [shape = 'u32[144,128]{1,0:T(1,128)}', space=vmem, size = 0x12000, scoped, tag = 'internal scratch']
  %s0 = inlined_call_operand.hbm [shape: f32[8,256], index: 0, kind: input, shape index: {}]
  %s1 = inlined_call_operand.vmem [shape: f32[8,1], index: 1, kind: input, shape index: {}]
  %s2 = inlined_call_operand.hbm [shape: f32[8,256], index: 2, kind: output, shape index: {}]
  %s3 = sld [smem:[#allocation0]]
  $region22: #{tpu_custom_call.1} parent=0
    _
  %s5 = ssub.s32 1, %s3
  %s6 = scalar_select 0, %s5, %s3
  $region1: #{tpu_custom_call.1} parent=0
    #allocation2 [shape = 'u8[8192]{0}', space=vmem, size = 0x2000, scoped, tag = 'input window, operand 0, single buffered']
    #allocation3 [shape = 's32[1]{0}', space=sflag, size = 0x4, scoped, tag = 'scoped memory for tpu_custom_call.1']
    #allocation4 [shape = 's32[1]{0}', space=sflag, size = 0x4, scoped, tag = 'scoped memory for tpu_custom_call.1']
    #allocation5 [shape = 'u8[8192]{0}', space=vmem, size = 0x2000, scoped, tag = 'output window, operand 0, single buffered']
    %7 = vsyncpa [#allocation3], 0
    %8 = vsyncpa [#allocation4], 0
    // Predicated region
    $region2: #{tpu_custom_call.1} parent=1 // pred_check
      _
    $region3: #{tpu_custom_call.1} parent=1 // pred_check_branch
      %10 = sbr.rel (0) target = $region5
    $region4: #{tpu_custom_call.1} parent=1 // pred_region
      %s12 = ssub.s32 256, 256
      %13 = vsyncadd [#allocation3], %s12
      %s15 = sshll.u32 [#allocation2], 4
      %s16 = int_to_ptr.vmem [resolvable:$true] %s15
      %18 = dma.hbm_to_vmem [thread:$0]  %s0, 256, %s16, [#allocation3]
    $region5: #{tpu_custom_call.1} parent=1 // pred_fallthru
      _
    // Predicated region
    $region6: #{tpu_custom_call.1} parent=1 // pred_check
      _
    $region7: #{tpu_custom_call.1} parent=1 // pred_check_branch
      %20 = sbr.rel (0) target = $region9
    $region8: #{tpu_custom_call.1} parent=1 // pred_region
      _
    $region9: #{tpu_custom_call.1} parent=1 // pred_fallthru
      _
    // Predicated region
    $region10: #{tpu_custom_call.1} parent=1 // pred_check
      _
    $region11: #{tpu_custom_call.1} parent=1 // pred_check_branch
      %22 = sbr.rel (0) target = $region13
    $region12: #{tpu_custom_call.1} parent=1 // pred_region
      %23 = dma.done [#allocation3], 256
    $region13: #{tpu_custom_call.1} parent=1 // pred_fallthru
      _
    %v24 = vld [vmem:[#allocation2] sm:$0xff]
    %v25 = vld [vmem:[#allocation2 + $0x8] sm:$0xff]
    %v26 = vld [vmem:[%s1] sm:$0xff]
    %28 = vset.pattern.permute.xlu0 0
    %29 = vperm.xlu0 %28, %v26
    %v30 = vpop.permute.xlu0 %29
    %v32 = vmul.f32 %v24, %v30
    %v33 = vmul.f32 %v25, %v30
    %34 = vst [vmem:[#allocation5] sm:$0xff] %v32
    %35 = vst [vmem:[#allocation5 + $0x8] sm:$0xff] %v33
    // Predicated region
    $region14: #{tpu_custom_call.1} parent=1 // pred_check
      _
    $region15: #{tpu_custom_call.1} parent=1 // pred_check_branch
      %37 = sbr.rel (0) target = $region17
    $region16: #{tpu_custom_call.1} parent=1 // pred_region
      %s39 = ssub.s32 256, 256
      %40 = vsyncadd [#allocation4], %s39
      %s42 = sshll.u32 [#allocation5], 4
      %s43 = int_to_ptr.vmem [resolvable:$true] %s42
      %45 = dma.vmem_to_hbm [thread:$0]  %s43, 256, %s2, [#allocation4]
    $region17: #{tpu_custom_call.1} parent=1 // pred_fallthru
      _
    // Predicated region
    $region18: #{tpu_custom_call.1} parent=1 // pred_check
      _
    $region19: #{tpu_custom_call.1} parent=1 // pred_check_branch
      %47 = sbr.rel (0) target = $region21
    $region20: #{tpu_custom_call.1} parent=1 // pred_region
      %48 = dma.done [#allocation4], 256
    $region21: #{tpu_custom_call.1} parent=1 // pred_fallthru
      _
    %49 = vsyncpa [#allocation3], 1
    %50 = vsyncpa [#allocation4], 1

</llo_original>
